<compile_context>
chip_gen: v7x
topology: tpu7x:2x2x1
jax: 0.10.0
libtpu: 0.0.40
codegen_flags: <defaults>
</compile_context>

<pallas_src>
import math
from functools import partial

import numpy as np
import jax
import jax.numpy as jnp
from jax import lax
from jax.experimental import pallas as pl
from jax.experimental.pallas import tpu as pltpu

_INV_SQRT2 = 1.0 / math.sqrt(2.0)


def _erf_approx(z):
    # Abramowitz & Stegun 7.1.26: max abs error 1.5e-7 (~= f32 eps).
    a1, a2, a3, a4, a5 = (0.254829592, -0.284496736, 1.421413741,
                          -1.453152027, 1.061405429)
    p = 0.3275911
    az = jnp.abs(z)
    t = 1.0 / (1.0 + p * az)
    poly = ((((a5 * t + a4) * t + a3) * t + a2) * t + a1) * t
    y = 1.0 - poly * jnp.exp(-az * az)
    return jnp.where(z >= 0.0, y, -y)


def _gelu_exact(x):
    # PyTorch nn.GELU() default: exact erf-based GELU (erf to ~f32 precision).
    return 0.5 * x * (1.0 + _erf_approx(x * _INV_SQRT2))


# ----------------------------------------------------------------------------
# Small constant operands built once at trace time (numpy, static shapes only).
# ----------------------------------------------------------------------------
def _bilinear_matrix_1d(n_in, n_out):
    """1-D interpolation matrix for nn.Upsample(mode='bilinear', align_corners=True)."""
    A = np.zeros((n_out, n_in), dtype=np.float32)
    if n_in == 1 or n_out == 1:
        A[:, 0] = 1.0
        return A
    scale = (n_in - 1) / (n_out - 1)
    for i in range(n_out):
        src = i * scale
        j0 = min(int(np.floor(src)), n_in - 1)
        j1 = min(j0 + 1, n_in - 1)
        f = src - j0
        A[i, j0] += 1.0 - f
        A[i, j1] += f
    return A


def _upsample_pad_matrix(h_in, w_in, H_out, W_out):
    """(H_out*W_out, h_in*w_in): 2x bilinear upsample (align_corners=True) then F.pad."""
    h_up, w_up = 2 * h_in, 2 * w_in
    diff_y, diff_x = H_out - h_up, W_out - w_up
    assert diff_y >= 0 and diff_x >= 0, "negative pad (crop) not supported"
    M = np.kron(_bilinear_matrix_1d(h_in, h_up), _bilinear_matrix_1d(w_in, w_up))
    pad_t, pad_l = diff_y // 2, diff_x // 2
    Mp = np.zeros((H_out * W_out, h_in * w_in), dtype=np.float32)
    for r in range(h_up):
        dst = (r + pad_t) * W_out + pad_l
        Mp[dst:dst + w_up, :] = M[r * w_up:(r + 1) * w_up, :]
    return Mp


def _conv_tap_masks(H, W):
    """(9, H*W) 0/1 masks that kill wrap-around lanes for each 3x3 tap (zero padding)."""
    hh, ww = np.meshgrid(np.arange(H), np.arange(W), indexing="ij")
    masks = np.zeros((9, H * W), dtype=np.float32)
    for kh in range(3):
        for kw in range(3):
            dy, dx = kh - 1, kw - 1
            m = (hh + dy >= 0) & (hh + dy < H) & (ww + dx >= 0) & (ww + dx < W)
            masks[kh * 3 + kw] = m.reshape(-1).astype(np.float32)
    return masks


# ----------------------------------------------------------------------------
# Kernel: one batch element per grid step.  All activations are (C, H*W) f32.
# ----------------------------------------------------------------------------
def _up_kernel(x1_ref, x2_ref, up_ref, mask_ref, w1_ref, b1_ref, w2_ref, b2_ref,
               o_ref, *, H, W):
    HW = H * W

    # ---- bilinear upsample (align_corners=True) + F.pad as one MXU matmul ----
    # x1_ref[0]: (C1, h*w), up_ref: (h*w, H*W) -> (C1, H*W)
    x1_up = jnp.dot(x1_ref[0], up_ref[...], preferred_element_type=jnp.float32)

    # ---- torch.cat([x2, x1_up], dim=1): channels stack on the sublane axis ----
    x = jnp.concatenate([x2_ref[0], x1_up], axis=0)            # (c_in, H*W)

    masks = mask_ref[...]                                      # (9, H*W)

    def conv3x3(a, w2d_ref, b_ref):
        # 3x3 "same" conv: 9 lane-rolled + boundary-masked views stacked along
        # the contraction axis -> one W[cout, 9*cin] @ patches[9*cin, HW] dot.
        taps = []
        for kh in range(3):
            for kw in range(3):
                d = (kh - 1) * W + (kw - 1)                    # flat spatial offset
                t = a if d == 0 else pltpu.roll(a, shift=(-d) % HW, axis=1)
                if not (kh == 1 and kw == 1):
                    k = kh * 3 + kw
                    t = t * masks[k:k + 1, :]                  # zero-padding mask
                taps.append(t)
        patches = jnp.concatenate(taps, axis=0)                # (9*cin, HW)
        # TODO(synk): for large channel counts cast w2d/patches to bfloat16 here
        # (keep preferred_element_type=f32) for higher MXU rate on v6e/v7x; kept
        # f32 to match PyTorch f32 Conv2d numerics.
        acc = jnp.dot(w2d_ref[...], patches,
                      preferred_element_type=jnp.float32)      # (cout, HW)
        return acc + b_ref[...]                                # bias bcast over lanes

    a1 = _gelu_exact(conv3x3(x, w1_ref, b1_ref))               # (c_mid, HW)
    a2 = _gelu_exact(conv3x3(a1, w2_ref, b2_ref))              # (c_out, HW)
    o_ref[0] = a2.astype(o_ref.dtype)


# ----------------------------------------------------------------------------
# Wrapper: Up.forward (bilinear=True path).
# ----------------------------------------------------------------------------
def up_forward_pallas(x1, x2, w1, b1, w2, b2):
    """x1: (N,C1,h,w) low-res, x2: (N,C2,H,W) skip.  Weights in PyTorch OIHW.
    Returns (N, c_out, H, W)."""
    N, C1, h, w = x1.shape
    N2, C2, H, W = x2.shape
    assert N == N2
    c_mid, c_in = w1.shape[0], w1.shape[1]
    c_out = w2.shape[0]
    assert c_in == C1 + C2 and w2.shape[1] == c_mid
    HW, hw = H * W, h * w

    # Flatten spatial onto the lane axis (free reshapes of contiguous NCHW).
    x1_flat = x1.reshape(N, C1, hw).astype(jnp.float32)
    x2_flat = x2.reshape(N, C2, HW).astype(jnp.float32)

    # Constant operands (tiny; built once at trace time).
    up_t = jnp.asarray(_upsample_pad_matrix(h, w, H, W).T)     # (hw, HW)
    masks = jnp.asarray(_conv_tap_masks(H, W))                 # (9, HW)
    # OIHW -> (o, kh, kw, i) -> (o, 9*i): matches patch row order tap*c_in + c.
    w1_2d = jnp.transpose(w1, (0, 2, 3, 1)).reshape(c_mid, 9 * c_in).astype(jnp.float32)
    w2_2d = jnp.transpose(w2, (0, 2, 3, 1)).reshape(c_out, 9 * c_mid).astype(jnp.float32)
    b1_2d = b1.reshape(c_mid, 1).astype(jnp.float32)
    b2_2d = b2.reshape(c_out, 1).astype(jnp.float32)

    kernel = partial(_up_kernel, H=H, W=W)

    flops = 2 * N * (C1 * hw * HW + HW * 9 * c_in * c_mid + HW * 9 * c_mid * c_out)
    transcendentals = N * HW * (c_mid + c_out)
    bytes_accessed = 4 * (N * (C1 * hw + C2 * HW + c_out * HW)
                          + hw * HW + 9 * HW
                          + c_mid * 9 * c_in + c_out * 9 * c_mid + c_mid + c_out)

    out_flat = pl.pallas_call(
        kernel,
        out_shape=jax.ShapeDtypeStruct((N, c_out, HW), jnp.float32),
        grid_spec=pltpu.PrefetchScalarGridSpec(
            num_scalar_prefetch=0,
            # TODO(synk): for realistic Up sizes add a row-tiled (1-row halo)
            # spatial grid axis and set vmem_limit_bytes so v7x (64 MiB VMEM,
            # 2 TensorCores) stays busy; unnecessary at these block sizes.
            grid=(N,),
            in_specs=[
                pl.BlockSpec((1, C1, hw), lambda n: (n, 0, 0)),
                pl.BlockSpec((1, C2, HW), lambda n: (n, 0, 0)),
                pl.BlockSpec((hw, HW), lambda n: (0, 0)),
                pl.BlockSpec((9, HW), lambda n: (0, 0)),
                pl.BlockSpec((c_mid, 9 * c_in), lambda n: (0, 0)),
                pl.BlockSpec((c_mid, 1), lambda n: (0, 0)),
                pl.BlockSpec((c_out, 9 * c_mid), lambda n: (0, 0)),
                pl.BlockSpec((c_out, 1), lambda n: (0, 0)),
            ],
            out_specs=pl.BlockSpec((1, c_out, HW), lambda n: (n, 0, 0)),
        ),
        compiler_params=pltpu.CompilerParams(dimension_semantics=("parallel",)),
        cost_estimate=pl.CostEstimate(flops=flops,
                                      transcendentals=transcendentals,
                                      bytes_accessed=bytes_accessed),
    )(x1_flat, x2_flat, up_t, masks, w1_2d, b1_2d, w2_2d, b2_2d)

    return out_flat.reshape(N, c_out, H, W)    # free reshape, already NCHW


# ----------------------------------------------------------------------------
# Pure-JAX reference (matches the PyTorch Up.forward with bilinear=True).
# ----------------------------------------------------------------------------
def _bilinear_upsample_ref(x, H_out, W_out):
    N, C, H_in, W_in = x.shape

    def src(n_in, n_out):
        if n_out == 1:
            return jnp.zeros((1,), jnp.float32)
        return jnp.arange(n_out, dtype=jnp.float32) * ((n_in - 1) / (n_out - 1))

    sy, sx = src(H_in, H_out), src(W_in, W_out)
    y0 = jnp.clip(jnp.floor(sy).astype(jnp.int32), 0, H_in - 1)
    y1 = jnp.clip(y0 + 1, 0, H_in - 1)
    fy = sy - y0.astype(jnp.float32)
    x0 = jnp.clip(jnp.floor(sx).astype(jnp.int32), 0, W_in - 1)
    x1 = jnp.clip(x0 + 1, 0, W_in - 1)
    fx = sx - x0.astype(jnp.float32)

    def wlerp(rows):
        a = jnp.take(rows, x0, axis=3)
        b = jnp.take(rows, x1, axis=3)
        return a * (1.0 - fx)[None, None, None, :] + b * fx[None, None, None, :]

    r0 = wlerp(jnp.take(x, y0, axis=2))
    r1 = wlerp(jnp.take(x, y1, axis=2))
    return r0 * (1.0 - fy)[None, None, :, None] + r1 * fy[None, None, :, None]


def _double_conv_ref(x, w1, b1, w2, b2):
    dn = lax.conv_dimension_numbers(x.shape, w1.shape, ("NCHW", "OIHW", "NCHW"))
    h = lax.conv_general_dilated(x, w1, (1, 1), ((1, 1), (1, 1)), dimension_numbers=dn)
    h = jax.nn.gelu(h + b1[None, :, None, None], approximate=False)
    dn2 = lax.conv_dimension_numbers(h.shape, w2.shape, ("NCHW", "OIHW", "NCHW"))
    o = lax.conv_general_dilated(h, w2, (1, 1), ((1, 1), (1, 1)), dimension_numbers=dn2)
    return jax.nn.gelu(o + b2[None, :, None, None], approximate=False)


def up_forward_ref(x1, x2, w1, b1, w2, b2):
    N, C1, h, w = x1.shape
    H, W = x2.shape[2], x2.shape[3]
    x1u = _bilinear_upsample_ref(x1, 2 * h, 2 * w)
    dy, dx = H - 2 * h, W - 2 * w
    x1u = jnp.pad(x1u, ((0, 0), (0, 0), (dy // 2, dy - dy // 2), (dx // 2, dx - dx // 2)))
    x = jnp.concatenate([x2, x1u], axis=1)
    return _double_conv_ref(x, w1, b1, w2, b2)


if __name__ == "__main__":
    # Up(in_channels=8, out_channels=8, bilinear=True):
    #   x1 (to be upsampled) has 4 channels at 8x8, skip x2 has 4 channels at 16x16,
    #   concat -> 8 channels, DoubleConv(8 -> mid=4 -> 8).
    # TODO(synk): bilinear=False branch (nn.ConvTranspose2d up-path) not implemented;
    # the module default bilinear=True path is covered.
    N, C1, C2 = 2, 4, 4
    in_channels = C1 + C2
    out_channels = 8
    mid = in_channels // 2
    h, w, H, W = 8, 8, 16, 16

    key = jax.random.PRNGKey(0)
    k1, k2, kw1, kb1, kw2, kb2 = jax.random.split(key, 6)
    x1 = jax.random.normal(k1, (N, C1, h, w), dtype=jnp.float32)
    x2 = jax.random.normal(k2, (N, C2, H, W), dtype=jnp.float32)
    w1 = jax.random.normal(kw1, (mid, in_channels, 3, 3), dtype=jnp.float32) * 0.1
    b1 = jax.random.normal(kb1, (mid,), dtype=jnp.float32) * 0.1
    w2 = jax.random.normal(kw2, (out_channels, mid, 3, 3), dtype=jnp.float32) * 0.1
    b2 = jax.random.normal(kb2, (out_channels,), dtype=jnp.float32) * 0.1

    out = jax.block_until_ready(up_forward_pallas(x1, x2, w1, b1, w2, b2))
    ref = jax.block_until_ready(up_forward_ref(x1, x2, w1, b1, w2, b2))

    assert out.shape == (N, out_channels, H, W)
    err = float(jnp.max(jnp.abs(out - ref)))
    assert jnp.allclose(out, ref, atol=1e-4, rtol=1e-4), f"max abs err = {err}"
    print("KERNEL_OK")
</pallas_src>

<mosaic_0001>
module attributes {stable_mosaic.version = 11 : i64} {
  func.func @_up_kernel(%arg0: i32, %arg1: memref<1x4x64xf32, #tpu.memory_space<vmem>>, %arg2: memref<1x4x256xf32, #tpu.memory_space<vmem>>, %arg3: memref<64x256xf32, #tpu.memory_space<vmem>>, %arg4: memref<9x256xf32, #tpu.memory_space<vmem>>, %arg5: memref<4x72xf32, #tpu.memory_space<vmem>>, %arg6: memref<4x1xf32, #tpu.memory_space<vmem>>, %arg7: memref<8x36xf32, #tpu.memory_space<vmem>>, %arg8: memref<8x1xf32, #tpu.memory_space<vmem>>, %arg9: memref<1x8x256xf32, #tpu.memory_space<vmem>>) attributes {dimension_semantics = [#tpu.dimension_semantics<parallel>], iteration_bounds = array<i64: 2>, scalar_prefetch = 0 : i64, scratch_operands = 0 : i64, tpu.core_type = #tpu.core_type<tc>, window_params = [{transform_indices = @transform_0, window_bounds = array<i64: 1, 4, 64>}, {transform_indices = @transform_1, window_bounds = array<i64: 1, 4, 256>}, {pipeline_mode = #tpu.pipeline_mode<synchronous>, transform_indices = @transform_2, window_bounds = array<i64: 64, 256>}, {pipeline_mode = #tpu.pipeline_mode<synchronous>, transform_indices = @transform_3, window_bounds = array<i64: 9, 256>}, {pipeline_mode = #tpu.pipeline_mode<synchronous>, transform_indices = @transform_4, window_bounds = array<i64: 4, 72>}, {pipeline_mode = #tpu.pipeline_mode<synchronous>, transform_indices = @transform_5, window_bounds = array<i64: 4, 1>}, {pipeline_mode = #tpu.pipeline_mode<synchronous>, transform_indices = @transform_6, window_bounds = array<i64: 8, 36>}, {pipeline_mode = #tpu.pipeline_mode<synchronous>, transform_indices = @transform_7, window_bounds = array<i64: 8, 1>}, {transform_indices = @transform_8, window_bounds = array<i64: 1, 8, 256>}]} {
    %c0 = arith.constant 0 : index
    %c0_0 = arith.constant 0 : index
    %c0_1 = arith.constant 0 : index
    %0 = vector.load %arg1[%c0, %c0_0, %c0_1] : memref<1x4x64xf32, #tpu.memory_space<vmem>>, vector<1x4x64xf32>
    %1 = vector.shape_cast %0 : vector<1x4x64xf32> to vector<4x64xf32>
    %c0_2 = arith.constant 0 : index
    %c0_3 = arith.constant 0 : index
    %2 = vector.load %arg3[%c0_2, %c0_3] : memref<64x256xf32, #tpu.memory_space<vmem>>, vector<64x256xf32>
    %cst = arith.constant dense<0.000000e+00> : vector<4x256xf32>
    %3 = tpu.matmul %1, %2, %cst {dimension_numbers = #tpu.dot_dimension_numbers<[1], [0], [0], [1], [0, 0, 1, 1], [], []>} : vector<4x64xf32>, vector<64x256xf32>, vector<4x256xf32> -> vector<4x256xf32>
    %c0_4 = arith.constant 0 : index
    %c0_5 = arith.constant 0 : index
    %c0_6 = arith.constant 0 : index
    %4 = vector.load %arg2[%c0_4, %c0_5, %c0_6] : memref<1x4x256xf32, #tpu.memory_space<vmem>>, vector<1x4x256xf32>
    %5 = vector.shape_cast %4 : vector<1x4x256xf32> to vector<4x256xf32>
    %6 = tpu.concatenate %5, %3 in 0 : vector<4x256xf32>, vector<4x256xf32> -> vector<8x256xf32>
    %c0_7 = arith.constant 0 : index
    %c0_8 = arith.constant 0 : index
    %7 = vector.load %arg4[%c0_7, %c0_8] : memref<9x256xf32, #tpu.memory_space<vmem>>, vector<9x256xf32>
    %c17_i32 = arith.constant 17 : i32
    %8 = tpu.dynamic_rotate %6 by %c17_i32 dim 1 : vector<8x256xf32>, i32 -> vector<8x256xf32>
    %9 = vector.extract_strided_slice %7 {offsets = [0, 0], sizes = [1, 256], strides = [1, 1]} : vector<9x256xf32> to vector<1x256xf32>
    %10 = vector.broadcast %9 : vector<1x256xf32> to vector<8x256xf32>
    %11 = arith.mulf %8, %10 : vector<8x256xf32>
    %c16_i32 = arith.constant 16 : i32
    %12 = tpu.dynamic_rotate %6 by %c16_i32 dim 1 : vector<8x256xf32>, i32 -> vector<8x256xf32>
    %13 = vector.extract_strided_slice %7 {offsets = [1, 0], sizes = [1, 256], strides = [1, 1]} : vector<9x256xf32> to vector<1x256xf32>
    %14 = vector.broadcast %13 : vector<1x256xf32> to vector<8x256xf32>
    %15 = arith.mulf %12, %14 : vector<8x256xf32>
    %c15_i32 = arith.constant 15 : i32
    %16 = tpu.dynamic_rotate %6 by %c15_i32 dim 1 : vector<8x256xf32>, i32 -> vector<8x256xf32>
    %17 = vector.extract_strided_slice %7 {offsets = [2, 0], sizes = [1, 256], strides = [1, 1]} : vector<9x256xf32> to vector<1x256xf32>
    %18 = vector.broadcast %17 : vector<1x256xf32> to vector<8x256xf32>
    %19 = arith.mulf %16, %18 : vector<8x256xf32>
    %c1_i32 = arith.constant 1 : i32
    %20 = tpu.dynamic_rotate %6 by %c1_i32 dim 1 : vector<8x256xf32>, i32 -> vector<8x256xf32>
    %21 = vector.extract_strided_slice %7 {offsets = [3, 0], sizes = [1, 256], strides = [1, 1]} : vector<9x256xf32> to vector<1x256xf32>
    %22 = vector.broadcast %21 : vector<1x256xf32> to vector<8x256xf32>
    %23 = arith.mulf %20, %22 : vector<8x256xf32>
    %c255_i32 = arith.constant 255 : i32
    %24 = tpu.dynamic_rotate %6 by %c255_i32 dim 1 : vector<8x256xf32>, i32 -> vector<8x256xf32>
    %25 = vector.extract_strided_slice %7 {offsets = [5, 0], sizes = [1, 256], strides = [1, 1]} : vector<9x256xf32> to vector<1x256xf32>
    %26 = vector.broadcast %25 : vector<1x256xf32> to vector<8x256xf32>
    %27 = arith.mulf %24, %26 : vector<8x256xf32>
    %c241_i32 = arith.constant 241 : i32
    %28 = tpu.dynamic_rotate %6 by %c241_i32 dim 1 : vector<8x256xf32>, i32 -> vector<8x256xf32>
    %29 = vector.extract_strided_slice %7 {offsets = [6, 0], sizes = [1, 256], strides = [1, 1]} : vector<9x256xf32> to vector<1x256xf32>
    %30 = vector.broadcast %29 : vector<1x256xf32> to vector<8x256xf32>
    %31 = arith.mulf %28, %30 : vector<8x256xf32>
    %c240_i32 = arith.constant 240 : i32
    %32 = tpu.dynamic_rotate %6 by %c240_i32 dim 1 : vector<8x256xf32>, i32 -> vector<8x256xf32>
    %33 = vector.extract_strided_slice %7 {offsets = [7, 0], sizes = [1, 256], strides = [1, 1]} : vector<9x256xf32> to vector<1x256xf32>
    %34 = vector.broadcast %33 : vector<1x256xf32> to vector<8x256xf32>
    %35 = arith.mulf %32, %34 : vector<8x256xf32>
    %c239_i32 = arith.constant 239 : i32
    %36 = tpu.dynamic_rotate %6 by %c239_i32 dim 1 : vector<8x256xf32>, i32 -> vector<8x256xf32>
    %37 = vector.extract_strided_slice %7 {offsets = [8, 0], sizes = [1, 256], strides = [1, 1]} : vector<9x256xf32> to vector<1x256xf32>
    %38 = vector.broadcast %37 : vector<1x256xf32> to vector<8x256xf32>
    %39 = arith.mulf %36, %38 : vector<8x256xf32>
    %40 = tpu.concatenate %11, %15, %19, %23, %6, %27, %31, %35, %39 in 0 : vector<8x256xf32>, vector<8x256xf32>, vector<8x256xf32>, vector<8x256xf32>, vector<8x256xf32>, vector<8x256xf32>, vector<8x256xf32>, vector<8x256xf32>, vector<8x256xf32> -> vector<72x256xf32>
    %c0_9 = arith.constant 0 : index
    %c0_10 = arith.constant 0 : index
    %41 = vector.load %arg5[%c0_9, %c0_10] : memref<4x72xf32, #tpu.memory_space<vmem>>, vector<4x72xf32>
    %cst_11 = arith.constant dense<0.000000e+00> : vector<4x256xf32>
    %42 = tpu.matmul %41, %40, %cst_11 {dimension_numbers = #tpu.dot_dimension_numbers<[1], [0], [0], [1], [0, 0, 1, 1], [], []>} : vector<4x72xf32>, vector<72x256xf32>, vector<4x256xf32> -> vector<4x256xf32>
    %c0_12 = arith.constant 0 : index
    %c0_13 = arith.constant 0 : index
    %43 = vector.load %arg6[%c0_12, %c0_13] : memref<4x1xf32, #tpu.memory_space<vmem>>, vector<4x1xf32>
    %44 = vector.broadcast %43 : vector<4x1xf32> to vector<4x256xf32>
    %45 = arith.addf %42, %44 : vector<4x256xf32>
    %cst_14 = arith.constant 5.000000e-01 : f32
    %46 = vector.broadcast %cst_14 : f32 to vector<4x256xf32>
    %47 = arith.mulf %46, %45 : vector<4x256xf32>
    %cst_15 = arith.constant 0.707106769 : f32
    %48 = vector.broadcast %cst_15 : f32 to vector<4x256xf32>
    %49 = arith.mulf %45, %48 : vector<4x256xf32>
    %50 = math.absf %49 : vector<4x256xf32>
    %cst_16 = arith.constant 0.327591091 : f32
    %51 = vector.broadcast %cst_16 : f32 to vector<4x256xf32>
    %52 = arith.mulf %51, %50 : vector<4x256xf32>
    %cst_17 = arith.constant 1.000000e+00 : f32
    %53 = vector.broadcast %cst_17 : f32 to vector<4x256xf32>
    %54 = arith.addf %53, %52 : vector<4x256xf32>
    %cst_18 = arith.constant 1.000000e+00 : f32
    %55 = vector.broadcast %cst_18 : f32 to vector<4x256xf32>
    %56 = arith.divf %55, %54 : vector<4x256xf32>
    %cst_19 = arith.constant 1.06140542 : f32
    %57 = vector.broadcast %cst_19 : f32 to vector<4x256xf32>
    %58 = arith.mulf %57, %56 : vector<4x256xf32>
    %cst_20 = arith.constant -1.45315206 : f32
    %59 = vector.broadcast %cst_20 : f32 to vector<4x256xf32>
    %60 = arith.addf %58, %59 : vector<4x256xf32>
    %61 = arith.mulf %60, %56 : vector<4x256xf32>
    %cst_21 = arith.constant 1.42141378 : f32
    %62 = vector.broadcast %cst_21 : f32 to vector<4x256xf32>
    %63 = arith.addf %61, %62 : vector<4x256xf32>
    %64 = arith.mulf %63, %56 : vector<4x256xf32>
    %cst_22 = arith.constant -0.284496725 : f32
    %65 = vector.broadcast %cst_22 : f32 to vector<4x256xf32>
    %66 = arith.addf %64, %65 : vector<4x256xf32>
    %67 = arith.mulf %66, %56 : vector<4x256xf32>
    %cst_23 = arith.constant 0.254829586 : f32
    %68 = vector.broadcast %cst_23 : f32 to vector<4x256xf32>
    %69 = arith.addf %67, %68 : vector<4x256xf32>
    %70 = arith.mulf %69, %56 : vector<4x256xf32>
    %cst_24 = arith.constant 0.000000e+00 : f32
    %71 = vector.broadcast %cst_24 : f32 to vector<4x256xf32>
    %72 = arith.subf %71, %50 : vector<4x256xf32>
    %73 = arith.mulf %72, %50 : vector<4x256xf32>
    %74 = math.exp %73 : vector<4x256xf32>
    %75 = arith.mulf %70, %74 : vector<4x256xf32>
    %cst_25 = arith.constant 1.000000e+00 : f32
    %76 = vector.broadcast %cst_25 : f32 to vector<4x256xf32>
    %77 = arith.subf %76, %75 : vector<4x256xf32>
    %cst_26 = arith.constant 0.000000e+00 : f32
    %78 = vector.broadcast %cst_26 : f32 to vector<4x256xf32>
    %79 = arith.cmpf oge, %49, %78 : vector<4x256xf32>
    %cst_27 = arith.constant 0.000000e+00 : f32
    %80 = vector.broadcast %cst_27 : f32 to vector<4x256xf32>
    %81 = arith.subf %80, %77 : vector<4x256xf32>
    %82 = arith.select %79, %77, %81 : vector<4x256xi1>, vector<4x256xf32>
    %cst_28 = arith.constant 1.000000e+00 : f32
    %83 = vector.broadcast %cst_28 : f32 to vector<4x256xf32>
    %84 = arith.addf %83, %82 : vector<4x256xf32>
    %85 = arith.mulf %47, %84 : vector<4x256xf32>
    %c17_i32_29 = arith.constant 17 : i32
    %86 = tpu.dynamic_rotate %85 by %c17_i32_29 dim 1 : vector<4x256xf32>, i32 -> vector<4x256xf32>
    %87 = vector.extract_strided_slice %7 {offsets = [0, 0], sizes = [1, 256], strides = [1, 1]} : vector<9x256xf32> to vector<1x256xf32>
    %88 = vector.broadcast %87 : vector<1x256xf32> to vector<4x256xf32>
    %89 = arith.mulf %86, %88 : vector<4x256xf32>
    %c16_i32_30 = arith.constant 16 : i32
    %90 = tpu.dynamic_rotate %85 by %c16_i32_30 dim 1 : vector<4x256xf32>, i32 -> vector<4x256xf32>
    %91 = vector.extract_strided_slice %7 {offsets = [1, 0], sizes = [1, 256], strides = [1, 1]} : vector<9x256xf32> to vector<1x256xf32>
    %92 = vector.broadcast %91 : vector<1x256xf32> to vector<4x256xf32>
    %93 = arith.mulf %90, %92 : vector<4x256xf32>
    %c15_i32_31 = arith.constant 15 : i32
    %94 = tpu.dynamic_rotate %85 by %c15_i32_31 dim 1 : vector<4x256xf32>, i32 -> vector<4x256xf32>
    %95 = vector.extract_strided_slice %7 {offsets = [2, 0], sizes = [1, 256], strides = [1, 1]} : vector<9x256xf32> to vector<1x256xf32>
    %96 = vector.broadcast %95 : vector<1x256xf32> to vector<4x256xf32>
    %97 = arith.mulf %94, %96 : vector<4x256xf32>
    %c1_i32_32 = arith.constant 1 : i32
    %98 = tpu.dynamic_rotate %85 by %c1_i32_32 dim 1 : vector<4x256xf32>, i32 -> vector<4x256xf32>
    %99 = vector.extract_strided_slice %7 {offsets = [3, 0], sizes = [1, 256], strides = [1, 1]} : vector<9x256xf32> to vector<1x256xf32>
    %100 = vector.broadcast %99 : vector<1x256xf32> to vector<4x256xf32>
    %101 = arith.mulf %98, %100 : vector<4x256xf32>
    %c255_i32_33 = arith.constant 255 : i32
    %102 = tpu.dynamic_rotate %85 by %c255_i32_33 dim 1 : vector<4x256xf32>, i32 -> vector<4x256xf32>
    %103 = vector.extract_strided_slice %7 {offsets = [5, 0], sizes = [1, 256], strides = [1, 1]} : vector<9x256xf32> to vector<1x256xf32>
    %104 = vector.broadcast %103 : vector<1x256xf32> to vector<4x256xf32>
    %105 = arith.mulf %102, %104 : vector<4x256xf32>
    %c241_i32_34 = arith.constant 241 : i32
    %106 = tpu.dynamic_rotate %85 by %c241_i32_34 dim 1 : vector<4x256xf32>, i32 -> vector<4x256xf32>
    %107 = vector.extract_strided_slice %7 {offsets = [6, 0], sizes = [1, 256], strides = [1, 1]} : vector<9x256xf32> to vector<1x256xf32>
    %108 = vector.broadcast %107 : vector<1x256xf32> to vector<4x256xf32>
    %109 = arith.mulf %106, %108 : vector<4x256xf32>
    %c240_i32_35 = arith.constant 240 : i32
    %110 = tpu.dynamic_rotate %85 by %c240_i32_35 dim 1 : vector<4x256xf32>, i32 -> vector<4x256xf32>
    %111 = vector.extract_strided_slice %7 {offsets = [7, 0], sizes = [1, 256], strides = [1, 1]} : vector<9x256xf32> to vector<1x256xf32>
    %112 = vector.broadcast %111 : vector<1x256xf32> to vector<4x256xf32>
    %113 = arith.mulf %110, %112 : vector<4x256xf32>
    %c239_i32_36 = arith.constant 239 : i32
    %114 = tpu.dynamic_rotate %85 by %c239_i32_36 dim 1 : vector<4x256xf32>, i32 -> vector<4x256xf32>
    %115 = vector.extract_strided_slice %7 {offsets = [8, 0], sizes = [1, 256], strides = [1, 1]} : vector<9x256xf32> to vector<1x256xf32>
    %116 = vector.broadcast %115 : vector<1x256xf32> to vector<4x256xf32>
    %117 = arith.mulf %114, %116 : vector<4x256xf32>
    %118 = tpu.concatenate %89, %93, %97, %101, %85, %105, %109, %113, %117 in 0 : vector<4x256xf32>, vector<4x256xf32>, vector<4x256xf32>, vector<4x256xf32>, vector<4x256xf32>, vector<4x256xf32>, vector<4x256xf32>, vector<4x256xf32>, vector<4x256xf32> -> vector<36x256xf32>
    %c0_37 = arith.constant 0 : index
    %c0_38 = arith.constant 0 : index
    %119 = vector.load %arg7[%c0_37, %c0_38] : memref<8x36xf32, #tpu.memory_space<vmem>>, vector<8x36xf32>
    %cst_39 = arith.constant dense<0.000000e+00> : vector<8x256xf32>
    %120 = tpu.matmul %119, %118, %cst_39 {dimension_numbers = #tpu.dot_dimension_numbers<[1], [0], [0], [1], [0, 0, 1, 1], [], []>} : vector<8x36xf32>, vector<36x256xf32>, vector<8x256xf32> -> vector<8x256xf32>
    %c0_40 = arith.constant 0 : index
    %c0_41 = arith.constant 0 : index
    %121 = vector.load %arg8[%c0_40, %c0_41] : memref<8x1xf32, #tpu.memory_space<vmem>>, vector<8x1xf32>
    %122 = vector.broadcast %121 : vector<8x1xf32> to vector<8x256xf32>
    %123 = arith.addf %120, %122 : vector<8x256xf32>
    %cst_42 = arith.constant 5.000000e-01 : f32
    %124 = vector.broadcast %cst_42 : f32 to vector<8x256xf32>
    %125 = arith.mulf %124, %123 : vector<8x256xf32>
    %cst_43 = arith.constant 0.707106769 : f32
    %126 = vector.broadcast %cst_43 : f32 to vector<8x256xf32>
    %127 = arith.mulf %123, %126 : vector<8x256xf32>
    %128 = math.absf %127 : vector<8x256xf32>
    %cst_44 = arith.constant 0.327591091 : f32
    %129 = vector.broadcast %cst_44 : f32 to vector<8x256xf32>
    %130 = arith.mulf %129, %128 : vector<8x256xf32>
    %cst_45 = arith.constant 1.000000e+00 : f32
    %131 = vector.broadcast %cst_45 : f32 to vector<8x256xf32>
    %132 = arith.addf %131, %130 : vector<8x256xf32>
    %cst_46 = arith.constant 1.000000e+00 : f32
    %133 = vector.broadcast %cst_46 : f32 to vector<8x256xf32>
    %134 = arith.divf %133, %132 : vector<8x256xf32>
    %cst_47 = arith.constant 1.06140542 : f32
    %135 = vector.broadcast %cst_47 : f32 to vector<8x256xf32>
    %136 = arith.mulf %135, %134 : vector<8x256xf32>
    %cst_48 = arith.constant -1.45315206 : f32
    %137 = vector.broadcast %cst_48 : f32 to vector<8x256xf32>
    %138 = arith.addf %136, %137 : vector<8x256xf32>
    %139 = arith.mulf %138, %134 : vector<8x256xf32>
    %cst_49 = arith.constant 1.42141378 : f32
    %140 = vector.broadcast %cst_49 : f32 to vector<8x256xf32>
    %141 = arith.addf %139, %140 : vector<8x256xf32>
    %142 = arith.mulf %141, %134 : vector<8x256xf32>
    %cst_50 = arith.constant -0.284496725 : f32
    %143 = vector.broadcast %cst_50 : f32 to vector<8x256xf32>
    %144 = arith.addf %142, %143 : vector<8x256xf32>
    %145 = arith.mulf %144, %134 : vector<8x256xf32>
    %cst_51 = arith.constant 0.254829586 : f32
    %146 = vector.broadcast %cst_51 : f32 to vector<8x256xf32>
    %147 = arith.addf %145, %146 : vector<8x256xf32>
    %148 = arith.mulf %147, %134 : vector<8x256xf32>
    %cst_52 = arith.constant 0.000000e+00 : f32
    %149 = vector.broadcast %cst_52 : f32 to vector<8x256xf32>
    %150 = arith.subf %149, %128 : vector<8x256xf32>
    %151 = arith.mulf %150, %128 : vector<8x256xf32>
    %152 = math.exp %151 : vector<8x256xf32>
    %153 = arith.mulf %148, %152 : vector<8x256xf32>
    %cst_53 = arith.constant 1.000000e+00 : f32
    %154 = vector.broadcast %cst_53 : f32 to vector<8x256xf32>
    %155 = arith.subf %154, %153 : vector<8x256xf32>
    %cst_54 = arith.constant 0.000000e+00 : f32
    %156 = vector.broadcast %cst_54 : f32 to vector<8x256xf32>
    %157 = arith.cmpf oge, %127, %156 : vector<8x256xf32>
    %cst_55 = arith.constant 0.000000e+00 : f32
    %158 = vector.broadcast %cst_55 : f32 to vector<8x256xf32>
    %159 = arith.subf %158, %155 : vector<8x256xf32>
    %160 = arith.select %157, %155, %159 : vector<8x256xi1>, vector<8x256xf32>
    %cst_56 = arith.constant 1.000000e+00 : f32
    %161 = vector.broadcast %cst_56 : f32 to vector<8x256xf32>
    %162 = arith.addf %161, %160 : vector<8x256xf32>
    %163 = arith.mulf %125, %162 : vector<8x256xf32>
    %c0_57 = arith.constant 0 : index
    %c0_58 = arith.constant 0 : index
    %c0_59 = arith.constant 0 : index
    %164 = vector.load %arg9[%c0_57, %c0_58, %c0_59] : memref<1x8x256xf32, #tpu.memory_space<vmem>>, vector<1x8x256xf32>
    %165 = vector.shape_cast %164 : vector<1x8x256xf32> to vector<8x256xf32>
    %166 = vector.shape_cast %163 : vector<8x256xf32> to vector<1x8x256xf32>
    tpu.vector_store %arg9[%c0_57, %c0_58, %c0_59], %166 {strides = array<i32>} : memref<1x8x256xf32, #tpu.memory_space<vmem>>, vector<1x8x256xf32>,
    return
  }
  func.func @transform_0(%arg0: i32) -> (i32, i32, i32) {
    %c0_i32 = arith.constant 0 : i32
    %c0_i32_0 = arith.constant 0 : i32
    %c0_i32_1 = arith.constant 0 : i32
    return %arg0, %c0_i32, %c0_i32_0 : i32, i32, i32
  }
  func.func @transform_1(%arg0: i32) -> (i32, i32, i32) {
    %c0_i32 = arith.constant 0 : i32
    %c0_i32_0 = arith.constant 0 : i32
    %c0_i32_1 = arith.constant 0 : i32
    return %arg0, %c0_i32, %c0_i32_0 : i32, i32, i32
  }
  func.func @transform_2(%arg0: i32) -> (i32, i32) {
    %c0_i32 = arith.constant 0 : i32
    %c0_i32_0 = arith.constant 0 : i32
    %c0_i32_1 = arith.constant 0 : i32
    return %c0_i32, %c0_i32_0 : i32, i32
  }
  func.func @transform_3(%arg0: i32) -> (i32, i32) {
    %c0_i32 = arith.constant 0 : i32
    %c0_i32_0 = arith.constant 0 : i32
    %c0_i32_1 = arith.constant 0 : i32
    return %c0_i32, %c0_i32_0 : i32, i32
  }
  func.func @transform_4(%arg0: i32) -> (i32, i32) {
    %c0_i32 = arith.constant 0 : i32
    %c0_i32_0 = arith.constant 0 : i32
    %c0_i32_1 = arith.constant 0 : i32
    return %c0_i32, %c0_i32_0 : i32, i32
  }
  func.func @transform_5(%arg0: i32) -> (i32, i32) {
    %c0_i32 = arith.constant 0 : i32
    %c0_i32_0 = arith.constant 0 : i32
    %c0_i32_1 = arith.constant 0 : i32
    return %c0_i32, %c0_i32_0 : i32, i32
  }
  func.func @transform_6(%arg0: i32) -> (i32, i32) {
    %c0_i32 = arith.constant 0 : i32
    %c0_i32_0 = arith.constant 0 : i32
    %c0_i32_1 = arith.constant 0 : i32
    return %c0_i32, %c0_i32_0 : i32, i32
  }
  func.func @transform_7(%arg0: i32) -> (i32, i32) {
    %c0_i32 = arith.constant 0 : i32
    %c0_i32_0 = arith.constant 0 : i32
    %c0_i32_1 = arith.constant 0 : i32
    return %c0_i32, %c0_i32_0 : i32, i32
  }
  func.func @transform_8(%arg0: i32) -> (i32, i32, i32) {
    %c0_i32 = arith.constant 0 : i32
    %c0_i32_0 = arith.constant 0 : i32
    %c0_i32_1 = arith.constant 0 : i32
    return %arg0, %c0_i32, %c0_i32_0 : i32, i32, i32
  }
}

</mosaic_0001>

<llo_original>
// kernel: tpu_custom_call.1
$region0: #{tpu_custom_call.1}
  #allocation0 [shape = 'u32[]', space=smem, size = 0x4, offset = 0x4, fixed_abs, tag = 'smem constant byte address 0x4 - core index']
  #allocation1 [shape = 'u32[144,128]{1,0:T(1,128)}', space=vmem, size = 0x12000, scoped, tag = 'internal scratch']
  %s0 = inlined_call_operand.hbm [shape: f32[2,4,64], index: 0, kind: input, shape index: {}]
  %s1 = inlined_call_operand.vmem [shape: f32[2,4,256], index: 1, kind: input, shape index: {}]
  %s2 = inlined_call_operand.hbm [shape: f32[64,256], index: 2, kind: input, shape index: {}]
  %s3 = inlined_call_operand.hbm [shape: f32[9,256], index: 3, kind: input, shape index: {}]
  %s4 = inlined_call_operand.vmem [shape: f32[4,72], index: 4, kind: input, shape index: {}]
  %s5 = inlined_call_operand.vmem [shape: f32[4,1], index: 5, kind: input, shape index: {}]
  %s6 = inlined_call_operand.vmem [shape: f32[8,36], index: 6, kind: input, shape index: {}]
  %s7 = inlined_call_operand.vmem [shape: f32[8,1], index: 7, kind: input, shape index: {}]
  %s8 = inlined_call_operand.hbm [shape: f32[2,8,256], index: 8, kind: output, shape index: {}]
  %s9 = sld [smem:[#allocation0]]
  $region77: #{tpu_custom_call.1} parent=0
    _
  %s11 = ssub.s32 1, %s9
  %s12 = scalar_select 0, %s11, %s9
  $region1: #{tpu_custom_call.1} parent=0
    #allocation2 [shape = 'u8[4096]{0}', space=vmem, size = 0x1000, scoped, tag = 'input window, operand 0']
    #allocation3 [shape = 's32[2]{0}', space=sflag, size = 0x8, scoped, tag = 'scoped memory for tpu_custom_call.1']
    #allocation4 [shape = 's32[2]{0}', space=sflag, size = 0x8, scoped, tag = 'scoped memory for tpu_custom_call.1']
    #allocation5 [shape = 'u8[65536]{0}', space=vmem, size = 0x10000, scoped, tag = 'input window, operand 2, single buffered']
    #allocation6 [shape = 's32[1]{0}', space=sflag, size = 0x4, scoped, tag = 'scoped memory for tpu_custom_call.1']
    #allocation7 [shape = 'u8[16384]{0}', space=vmem, size = 0x4000, scoped, tag = 'input window, operand 3, single buffered']
    #allocation8 [shape = 'u8[16384]{0}', space=vmem, size = 0x4000, scoped, tag = 'output window, operand 0']
    %13 = vsyncpa [#allocation3], 0
    %s14 = scalar_lea.sflag [#allocation3], 1
    %15 = vsyncpa %s14, 0
    %16 = vsyncpa [#allocation6], 0
    %17 = vsyncpa [#allocation4], 0
    %s18 = scalar_lea.sflag [#allocation4], 1
    %19 = vsyncpa %s18, 0
    loop: start=0, step=1, limit=4
    $region2: #{tpu_custom_call.1} parent=1 // loop_pre_header
      _
    $region3: #{tpu_custom_call.1} parent=1 // loop_header
      %s21 = sphi 0, %s25
      %p22 = scmp.ge.s32.totalorder %s21, 4
      %s31 = sphi 0, %s33
      %s34 = sphi 0, %s31
      %s35 = sphi 0, %s34
      %s51 = sphi 0, %s35
      %s57 = sphi 0, %s59
      %s60 = sphi 0, %s57
      %s61 = sphi 0, %s60
      %s77 = sphi 0, %s61
      %s81 = sphi 0, %s81
      %s83 = sphi 0, %s81
      %s84 = sphi 0, %s83
      %s98 = sphi 0, %s84
      %s102 = sphi 0, %s102
      %s104 = sphi 0, %s102
      %s105 = sphi 0, %s104
      %s119 = sphi 0, %s105
      %s123 = sphi 0, %s123
      %s125 = sphi 0, %s123
      %s126 = sphi 0, %s125
      %s140 = sphi 0, %s126
      %s144 = sphi 0, %s144
      %s146 = sphi 0, %s144
      %s147 = sphi 0, %s146
      %s161 = sphi 0, %s147
      %s165 = sphi 0, %s165
      %s167 = sphi 0, %s165
      %s168 = sphi 0, %s167
      %s182 = sphi 0, %s168
      %s186 = sphi 0, %s186
      %s188 = sphi 0, %s186
      %s189 = sphi 0, %s188
      %s203 = sphi 0, %s189
      %s209 = sphi 0, %s211
      %s212 = sphi 0, %s209
      %s213 = sphi 0, %s212
      %s229 = sphi 0, %s213
    $region4: #{tpu_custom_call.1} parent=1 // loop_header_branch
      %24 = sbr.rel (%p22) target = $region8
    $region5: #{tpu_custom_call.1} parent=1 // loop_body
      %s26 = ssub.s32 %s21, 1
      %s27 = ssub.s32 %s21, 2
      %s28 = sadd.s32 %s21, 1
      %s29 = ssub.s32 %s21, %s28
      %p30 = scmp.eq.s32.totalorder %s29, 0
      %s32 = sadd.s32 %s31, 1
      %s33 = scalar_select %p30, %s31, %s32
      %p36 = pneg %p30
      %p37 = scmp.eq.s32.totalorder %s21, 1
      %p38 = por %p36, %p37
      %p39 = scmp.ne.s32.totalorder %s31, %s34
      %p40 = scmp.eq.s32.totalorder %s21, 0
      %p41 = por %p39, %p40
      %p42 = scmp.ne.s32.totalorder %s31, %s34
      %p43 = scmp.eq.s32.totalorder %s26, 1
      %p44 = por %p42, %p43
      %p45 = scmp.ne.s32.totalorder %s34, %s35
      %p46 = scmp.eq.s32.totalorder %s26, 0
      %p47 = por %p45, %p46
      %p48 = scmp.ne.s32.totalorder %s34, %s35
      %p49 = scmp.eq.s32.totalorder %s27, 1
      %p50 = por %p48, %p49
      %p52 = scmp.ne.s32.totalorder %s35, %s51
      %p53 = scmp.eq.s32.totalorder %s27, 0
      %p54 = por %p52, %p53
      %s55 = ssub.s32 %s21, %s28
      %p56 = scmp.eq.s32.totalorder %s55, 0
      %s58 = sadd.s32 %s57, 1
      %s59 = scalar_select %p56, %s57, %s58
      %p62 = pneg %p56
      %p63 = scmp.eq.s32.totalorder %s21, 1
      %p64 = por %p62, %p63
      %p65 = scmp.ne.s32.totalorder %s57, %s60
      %p66 = scmp.eq.s32.totalorder %s21, 0
      %p67 = por %p65, %p66
      %p68 = scmp.ne.s32.totalorder %s57, %s60
      %p69 = scmp.eq.s32.totalorder %s26, 1
      %p70 = por %p68, %p69
      %p71 = scmp.ne.s32.totalorder %s60, %s61
      %p72 = scmp.eq.s32.totalorder %s26, 0
      %p73 = por %p71, %p72
      %p74 = scmp.ne.s32.totalorder %s60, %s61
      %p75 = scmp.eq.s32.totalorder %s27, 1
      %p76 = por %p74, %p75
      %p78 = scmp.ne.s32.totalorder %s61, %s77
      %p79 = scmp.eq.s32.totalorder %s27, 0
      %p80 = por %p78, %p79
      %s82 = sadd.s32 %s81, 1
      %p85 = scmp.eq.s32.totalorder %s21, 1
      %p86 = scmp.ne.s32.totalorder %s81, %s83
      %p87 = scmp.eq.s32.totalorder %s21, 0
      %p88 = por %p86, %p87
      %p89 = scmp.ne.s32.totalorder %s81, %s83
      %p90 = scmp.eq.s32.totalorder %s26, 1
      %p91 = por %p89, %p90
      %p92 = scmp.ne.s32.totalorder %s83, %s84
      %p93 = scmp.eq.s32.totalorder %s26, 0
      %p94 = por %p92, %p93
      %p95 = scmp.ne.s32.totalorder %s83, %s84
      %p96 = scmp.eq.s32.totalorder %s27, 1
      %p97 = por %p95, %p96
      %p99 = scmp.ne.s32.totalorder %s84, %s98
      %p100 = scmp.eq.s32.totalorder %s27, 0
      %p101 = por %p99, %p100
      %s103 = sadd.s32 %s102, 1
      %p106 = scmp.eq.s32.totalorder %s21, 1
      %p107 = scmp.ne.s32.totalorder %s102, %s104
      %p108 = scmp.eq.s32.totalorder %s21, 0
      %p109 = por %p107, %p108
      %p110 = scmp.ne.s32.totalorder %s102, %s104
      %p111 = scmp.eq.s32.totalorder %s26, 1
      %p112 = por %p110, %p111
      %p113 = scmp.ne.s32.totalorder %s104, %s105
      %p114 = scmp.eq.s32.totalorder %s26, 0
      %p115 = por %p113, %p114
      %p116 = scmp.ne.s32.totalorder %s104, %s105
      %p117 = scmp.eq.s32.totalorder %s27, 1
      %p118 = por %p116, %p117
      %p120 = scmp.ne.s32.totalorder %s105, %s119
      %p121 = scmp.eq.s32.totalorder %s27, 0
      %p122 = por %p120, %p121
      %s124 = sadd.s32 %s123, 1
      %p127 = scmp.eq.s32.totalorder %s21, 1
      %p128 = scmp.ne.s32.totalorder %s123, %s125
      %p129 = scmp.eq.s32.totalorder %s21, 0
      %p130 = por %p128, %p129
      %p131 = scmp.ne.s32.totalorder %s123, %s125
      %p132 = scmp.eq.s32.totalorder %s26, 1
      %p133 = por %p131, %p132
      %p134 = scmp.ne.s32.totalorder %s125, %s126
      %p135 = scmp.eq.s32.totalorder %s26, 0
      %p136 = por %p134, %p135
      %p137 = scmp.ne.s32.totalorder %s125, %s126
      %p138 = scmp.eq.s32.totalorder %s27, 1
      %p139 = por %p137, %p138
      %p141 = scmp.ne.s32.totalorder %s126, %s140
      %p142 = scmp.eq.s32.totalorder %s27, 0
      %p143 = por %p141, %p142
      %s145 = sadd.s32 %s144, 1
      %p148 = scmp.eq.s32.totalorder %s21, 1
      %p149 = scmp.ne.s32.totalorder %s144, %s146
      %p150 = scmp.eq.s32.totalorder %s21, 0
      %p151 = por %p149, %p150
      %p152 = scmp.ne.s32.totalorder %s144, %s146
      %p153 = scmp.eq.s32.totalorder %s26, 1
      %p154 = por %p152, %p153
      %p155 = scmp.ne.s32.totalorder %s146, %s147
      %p156 = scmp.eq.s32.totalorder %s26, 0
      %p157 = por %p155, %p156
      %p158 = scmp.ne.s32.totalorder %s146, %s147
      %p159 = scmp.eq.s32.totalorder %s27, 1
      %p160 = por %p158, %p159
      %p162 = scmp.ne.s32.totalorder %s147, %s161
      %p163 = scmp.eq.s32.totalorder %s27, 0
      %p164 = por %p162, %p163
      %s166 = sadd.s32 %s165, 1
      %p169 = scmp.eq.s32.totalorder %s21, 1
      %p170 = scmp.ne.s32.totalorder %s165, %s167
      %p171 = scmp.eq.s32.totalorder %s21, 0
      %p172 = por %p170, %p171
      %p173 = scmp.ne.s32.totalorder %s165, %s167
      %p174 = scmp.eq.s32.totalorder %s26, 1
      %p175 = por %p173, %p174
      %p176 = scmp.ne.s32.totalorder %s167, %s168
      %p177 = scmp.eq.s32.totalorder %s26, 0
      %p178 = por %p176, %p177
      %p179 = scmp.ne.s32.totalorder %s167, %s168
      %p180 = scmp.eq.s32.totalorder %s27, 1
      %p181 = por %p179, %p180
      %p183 = scmp.ne.s32.totalorder %s168, %s182
      %p184 = scmp.eq.s32.totalorder %s27, 0
      %p185 = por %p183, %p184
      %s187 = sadd.s32 %s186, 1
      %p190 = scmp.eq.s32.totalorder %s21, 1
      %p191 = scmp.ne.s32.totalorder %s186, %s188
      %p192 = scmp.eq.s32.totalorder %s21, 0
      %p193 = por %p191, %p192
      %p194 = scmp.ne.s32.totalorder %s186, %s188
      %p195 = scmp.eq.s32.totalorder %s26, 1
      %p196 = por %p194, %p195
      %p197 = scmp.ne.s32.totalorder %s188, %s189
      %p198 = scmp.eq.s32.totalorder %s26, 0
      %p199 = por %p197, %p198
      %p200 = scmp.ne.s32.totalorder %s188, %s189
      %p201 = scmp.eq.s32.totalorder %s27, 1
      %p202 = por %p200, %p201
      %p204 = scmp.ne.s32.totalorder %s189, %s203
      %p205 = scmp.eq.s32.totalorder %s27, 0
      %p206 = por %p204, %p205
      %s207 = ssub.s32 %s21, %s28
      %p208 = scmp.eq.s32.totalorder %s207, 0
      %s210 = sadd.s32 %s209, 1
      %s211 = scalar_select %p208, %s209, %s210
      %p214 = pneg %p208
      %p215 = scmp.eq.s32.totalorder %s21, 1
      %p216 = por %p214, %p215
      %p217 = scmp.ne.s32.totalorder %s209, %s212
      %p218 = scmp.eq.s32.totalorder %s21, 0
      %p219 = por %p217, %p218
      %p220 = scmp.ne.s32.totalorder %s209, %s212
      %p221 = scmp.eq.s32.totalorder %s26, 1
      %p222 = por %p220, %p221
      %p223 = scmp.ne.s32.totalorder %s212, %s213
      %p224 = scmp.eq.s32.totalorder %s26, 0
      %p225 = por %p223, %p224
      %p226 = scmp.ne.s32.totalorder %s212, %s213
      %p227 = scmp.eq.s32.totalorder %s27, 1
      %p228 = por %p226, %p227
      %p230 = scmp.ne.s32.totalorder %s213, %s229
      %p231 = scmp.eq.s32.totalorder %s27, 0
      %p232 = por %p230, %p231
      %p233 = scmp.le.s32.totalorder 1, %s21
      %p234 = scmp.lt.s32.totalorder %s21, 3
      %p235 = pnand %p233, %p234
      %p236 = pneg %p235
      // Predicated region
      $region9: #{tpu_custom_call.1} parent=5 // pred_check
        _
      $region10: #{tpu_custom_call.1} parent=5 // pred_check_branch
        %238 = sbr.rel (%p235) target = $region12
      $region11: #{tpu_custom_call.1} parent=5 // pred_region
        %s239 = ssub.s32 %s21, 1
        // Predicated region
        $region13: #{tpu_custom_call.1} parent=11 // pred_check
          %p240 = pneg %p94
        $region14: #{tpu_custom_call.1} parent=11 // pred_check_branch
          %242 = sbr.rel (%p240) target = $region16
        $region15: #{tpu_custom_call.1} parent=11 // pred_region
          %s244 = ssub.s32 2048, 2048
          %245 = vsyncadd [#allocation6], %s244
          %s246 = sshll.u32 [#allocation5], 4
          %s247 = int_to_ptr.vmem [resolvable:$true] %s246
          %252 = dma.hbm_to_vmem [thread:$0]  %s2, 2048, %s247, [#allocation6], 256, 256, 16
        $region16: #{tpu_custom_call.1} parent=11 // pred_fallthru
          _
        // Predicated region
        $region17: #{tpu_custom_call.1} parent=11 // pred_check
          %p253 = pneg %p115
        $region18: #{tpu_custom_call.1} parent=11 // pred_check_branch
          %255 = sbr.rel (%p253) target = $region20
        $region19: #{tpu_custom_call.1} parent=11 // pred_region
          %s257 = ssub.s32 512, 512
          %258 = vsyncadd [#allocation6], %s257
          %s259 = sshll.u32 [#allocation7], 4
          %s260 = int_to_ptr.vmem [resolvable:$true] %s259
          %265 = dma.hbm_to_vmem [thread:$0]  %s3, 512, %s260, [#allocation6], 256, 256, 16
        $region20: #{tpu_custom_call.1} parent=11 // pred_fallthru
          _
        // Predicated region
        $region21: #{tpu_custom_call.1} parent=11 // pred_check
          %p266 = pneg %p136
        $region22: #{tpu_custom_call.1} parent=11 // pred_check_branch
          %268 = sbr.rel (%p266) target = $region24
        $region23: #{tpu_custom_call.1} parent=11 // pred_region
          _
        $region24: #{tpu_custom_call.1} parent=11 // pred_fallthru
          _
        // Predicated region
        $region25: #{tpu_custom_call.1} parent=11 // pred_check
          %p269 = pneg %p157
        $region26: #{tpu_custom_call.1} parent=11 // pred_check_branch
          %271 = sbr.rel (%p269) target = $region28
        $region27: #{tpu_custom_call.1} parent=11 // pred_region
          _
        $region28: #{tpu_custom_call.1} parent=11 // pred_fallthru
          _
        // Predicated region
        $region29: #{tpu_custom_call.1} parent=11 // pred_check
          %p272 = pneg %p178
        $region30: #{tpu_custom_call.1} parent=11 // pred_check_branch
          %274 = sbr.rel (%p272) target = $region32
        $region31: #{tpu_custom_call.1} parent=11 // pred_region
          _
        $region32: #{tpu_custom_call.1} parent=11 // pred_fallthru
          _
        // Predicated region
        $region33: #{tpu_custom_call.1} parent=11 // pred_check
          %p275 = pneg %p199
        $region34: #{tpu_custom_call.1} parent=11 // pred_check_branch
          %277 = sbr.rel (%p275) target = $region36
        $region35: #{tpu_custom_call.1} parent=11 // pred_region
          _
        $region36: #{tpu_custom_call.1} parent=11 // pred_fallthru
          _
      $region12: #{tpu_custom_call.1} parent=5 // pred_fallthru
        _
      %p278 = scmp.lt.s32.totalorder %s21, 2
      // Predicated region
      $region37: #{tpu_custom_call.1} parent=5 // pred_check
        %p279 = pneg %p278
      $region38: #{tpu_custom_call.1} parent=5 // pred_check_branch
        %281 = sbr.rel (%p279) target = $region40
      $region39: #{tpu_custom_call.1} parent=5 // pred_region
        // Predicated region
        $region41: #{tpu_custom_call.1} parent=39 // pred_check
          %p282 = pneg %p41
        $region42: #{tpu_custom_call.1} parent=39 // pred_check_branch
          %284 = sbr.rel (%p282) target = $region44
        $region43: #{tpu_custom_call.1} parent=39 // pred_region
          %s285 = sand.u32 %s31, 1
          %s286 = scalar_lea.sflag [#allocation3], %s285
          %s287 = sand.u32 %s31, 1
          %s288 = smul.addr %s287, 4
          %s289 = scalar_lea.vmem [#allocation2], %s288
          %s291 = ssub.s32 64, 64
          %292 = vsyncadd %s286, %s291
          %s293 = smul.addr %s21, 64
          %s294 = scalar_lea.hbm %s0, %s293
          %s296 = sshll.u32 %s289, 4
          %s297 = int_to_ptr.vmem [resolvable:$true] %s296
          %299 = dma.hbm_to_vmem [thread:$0]  %s294, 64, %s297, %s286
        $region44: #{tpu_custom_call.1} parent=39 // pred_fallthru
          _
        // Predicated region
        $region45: #{tpu_custom_call.1} parent=39 // pred_check
          %p300 = pneg %p67
        $region46: #{tpu_custom_call.1} parent=39 // pred_check_branch
          %302 = sbr.rel (%p300) target = $region48
        $region47: #{tpu_custom_call.1} parent=39 // pred_region
          %p303 = scmp.lt.s32.totalorder %s21, 1
          %s304 = scalar_select %p303, %s21, 1
          %s305 = smul.addr %s304, 2
          %s306 = smul.addr %s305, 4
          %s307 = scalar_lea.vmem %s1, %s306
        $region48: #{tpu_custom_call.1} parent=39 // pred_fallthru
          _
      $region40: #{tpu_custom_call.1} parent=5 // pred_fallthru
        _
      %p308 = scmp.le.s32.totalorder 1, %s21
      %p309 = scmp.lt.s32.totalorder %s21, 3
      %p310 = pnand %p308, %p309
      %p311 = pneg %p310
      // Predicated region
      $region49: #{tpu_custom_call.1} parent=5 // pred_check
        _
      $region50: #{tpu_custom_call.1} parent=5 // pred_check_branch
        %313 = sbr.rel (%p310) target = $region52
      $region51: #{tpu_custom_call.1} parent=5 // pred_region
        %s314 = ssub.s32 %s21, 1
        %s315 = sand.u32 %s34, 1
        %s316 = scalar_lea.sflag [#allocation3], %s315
        %s317 = sand.u32 %s34, 1
        %s318 = smul.addr %s317, 4
        %s319 = scalar_lea.vmem [#allocation2], %s318
        // Predicated region
        $region53: #{tpu_custom_call.1} parent=51 // pred_check
          %p320 = pneg %p47
        $region54: #{tpu_custom_call.1} parent=51 // pred_check_branch
          %322 = sbr.rel (%p320) target = $region56
        $region55: #{tpu_custom_call.1} parent=51 // pred_region
          %323 = dma.done %s316, 64
        $region56: #{tpu_custom_call.1} parent=51 // pred_fallthru
          _
        // Predicated region
        $region57: #{tpu_custom_call.1} parent=51 // pred_check
          %p324 = pneg %p94
        $region58: #{tpu_custom_call.1} parent=51 // pred_check_branch
          %326 = sbr.rel (%p324) target = $region60
        $region59: #{tpu_custom_call.1} parent=51 // pred_region
          %327 = dma.done [#allocation6], 2048
        $region60: #{tpu_custom_call.1} parent=51 // pred_fallthru
          _
        // Predicated region
        $region61: #{tpu_custom_call.1} parent=51 // pred_check
          %p328 = pneg %p115
        $region62: #{tpu_custom_call.1} parent=51 // pred_check_branch
          %330 = sbr.rel (%p328) target = $region64
        $region63: #{tpu_custom_call.1} parent=51 // pred_region
          %331 = dma.done [#allocation6], 512
        $region64: #{tpu_custom_call.1} parent=51 // pred_fallthru
          _
        %s332 = sand.u32 %s34, 1
        %s333 = scalar_lea.sflag [#allocation3], %s332
        %s334 = sand.u32 %s34, 1
        %s335 = smul.addr %s334, 4
        %s336 = scalar_lea.vmem [#allocation2], %s335
        %p337 = pneg %p47
        %p338 = pneg %p44
        %p339 = scmp.lt.s32.totalorder %s26, 1
        %s340 = scalar_select %p339, %s26, 1
        %s341 = smul.addr %s340, 2
        %s342 = smul.addr %s341, 4
        %s343 = scalar_lea.vmem %s1, %s342
        %p344 = pneg %p73
        %p345 = pneg %p70
        %p346 = pneg %p94
        %p347 = pneg %p91
        %p348 = pneg %p115
        %p349 = pneg %p112
        %p350 = pneg %p136
        %p351 = pneg %p133
        %p352 = pneg %p157
        %p353 = pneg %p154
        %p354 = pneg %p178
        %p355 = pneg %p175
        %p356 = pneg %p199
        %p357 = pneg %p196
        %p358 = pneg %p225
        %p359 = pneg %p222
        %s360 = sand.u32 %s212, 1
        %s361 = scalar_lea.sflag [#allocation4], %s360
        %s362 = sand.u32 %s212, 1
        %s363 = smul.addr %s362, 16
        %s364 = scalar_lea.vmem [#allocation8], %s363
        %p365 = scmp.lt.s32.totalorder %s26, 1
        %s366 = scalar_select %p365, %s26, 1
        %s367 = smul.addr %s366, 2
        %s368 = smul.addr %s367, 4
        %s369 = scalar_lea.vmem %s1, %s368
        %v370 = vld [vmem:[%s319] sm:$0xf]
        %v371 = vld [vmem:[#allocation5] sm:$0xff]
        %v372 = vld [vmem:[#allocation5 + $0x8] sm:$0xff]
        %v373 = vld [vmem:[#allocation5 + $0x10] sm:$0xff]
        %v374 = vld [vmem:[#allocation5 + $0x18] sm:$0xff]
        %v375 = vld [vmem:[#allocation5 + $0x20] sm:$0xff]
        %v376 = vld [vmem:[#allocation5 + $0x28] sm:$0xff]
        %v377 = vld [vmem:[#allocation5 + $0x30] sm:$0xff]
        %v378 = vld [vmem:[#allocation5 + $0x38] sm:$0xff]
        %v379 = vld [vmem:[#allocation5 + $0x40] sm:$0xff]
        %v380 = vld [vmem:[#allocation5 + $0x48] sm:$0xff]
        %v381 = vld [vmem:[#allocation5 + $0x50] sm:$0xff]
        %v382 = vld [vmem:[#allocation5 + $0x58] sm:$0xff]
        %v383 = vld [vmem:[#allocation5 + $0x60] sm:$0xff]
        %v384 = vld [vmem:[#allocation5 + $0x68] sm:$0xff]
        %v385 = vld [vmem:[#allocation5 + $0x70] sm:$0xff]
        %v386 = vld [vmem:[#allocation5 + $0x78] sm:$0xff]
        %vm387 = vcmask 523264
        %v389 = vsel %vm387, %v370, 0
        %391 = vmatprep.subr.mxu0 %v372
        %392 = vmatpush1.msra.mxu0 %v371
        %393 = vmatprep.subr.mxu0 %v374
        %394 = vmatpush1.msra.mxu0 %v373
        %395 = vmatprep.subr.mxu0 %v376
        %396 = vmatpush1.msra.mxu0 %v375
        %397 = vmatprep.subr.mxu0 %v378
        %398 = vmatpush1.msra.mxu0 %v377
        %399 = vmatprep.subr.mxu0 %v380
        %400 = vmatpush1.msra.mxu0 %v379
        %401 = vmatprep.subr.mxu0 %v382
        %402 = vmatpush1.msra.mxu0 %v381
        %403 = vmatprep.subr.mxu0 %v384
        %404 = vmatpush1.msra.mxu0 %v383
        %405 = vmatprep.subr.mxu0 %v386
        %406 = vmatpush1.msra.mxu0 %v385
        %407 = vmatprep.subr.mxu0 0.0
        %408 = vmatpush1.msra.mxu0 0.0
        %409 = vmatprep.subr.mxu0 0.0
        %410 = vmatpush1.msra.mxu0 0.0
        %411 = vmatprep.subr.mxu0 0.0
        %412 = vmatpush1.msra.mxu0 0.0
        %413 = vmatprep.subr.mxu0 0.0
        %414 = vmatpush1.msra.mxu0 0.0
        %415 = vmatprep.subr.mxu0 0.0
        %416 = vmatpush1.msra.mxu0 0.0
        %417 = vmatprep.subr.mxu0 0.0
        %418 = vmatpush1.msra.mxu0 0.0
        %419 = vmatprep.subr.mxu0 0.0
        %420 = vmatpush1.msra.mxu0 0.0
        %421 = vmatprep.subr.mxu0 0.0
        %422 = vmatpush1.msra.mxu0 0.0
        %423 = vmatprep.subr.mxu0 0.0
        %424 = vmatpush1.msra.mxu0 0.0
        %425 = vmatprep.subr.mxu0 0.0
        %426 = vmatpush1.msra.mxu0 0.0
        %427 = vmatprep.subr.mxu0 0.0
        %428 = vmatpush1.msra.mxu0 0.0
        %429 = vmatprep.subr.mxu0 0.0
        %430 = vmatpush1.msra.mxu0 0.0
        %431 = vmatprep.subr.mxu0 0.0
        %432 = vmatpush1.msra.mxu0 0.0
        %433 = vmatprep.subr.mxu0 0.0
        %434 = vmatpush1.msra.mxu0 0.0
        %435 = vmatprep.subr.mxu0 0.0
        %436 = vmatpush1.msra.mxu0 0.0
        %437 = vmatprep.subr.mxu0 0.0
        %438 = vmatpush1.msra.mxu0 0.0
        %439 = vmatprep.subr.mxu0 0.0
        %440 = vmatpush1.msra.mxu0 0.0
        %441 = vmatprep.subr.mxu0 0.0
        %442 = vmatpush1.msra.mxu0 0.0
        %443 = vmatprep.subr.mxu0 0.0
        %444 = vmatpush1.msra.mxu0 0.0
        %445 = vmatprep.subr.mxu0 0.0
        %446 = vmatpush1.msra.mxu0 0.0
        %447 = vmatprep.subr.mxu0 0.0
        %448 = vmatpush1.msra.mxu0 0.0
        %449 = vmatprep.subr.mxu0 0.0
        %450 = vmatpush1.msra.mxu0 0.0
        %451 = vmatprep.subr.mxu0 0.0
        %452 = vmatpush1.msra.mxu0 0.0
        %453 = vmatprep.subr.mxu0 0.0
        %454 = vmatpush1.msra.mxu0 0.0
        %455 = vmatprep.mubr.f32.mxu0 0.0
        %456 = vmatmul.mubr.f32.gmra.mrb[0].mxu0 %v389
        %v457 = vpop.f32.mrb[0].mxu0
        %v458 = vadd.f32 0.0, %v457
        %v459 = vpop.f32.mrb[0].mxu0
        %v460 = vadd.f32 0.0, %v459
        %461 = vdwg.mxu0
        %v462 = vld [vmem:[%s369] sm:$0xff]
        %v464 = vcombine.high %v462, %v462
        %v468 = vrot.slane %v458, 4
        %v469 = vrot.slane %v460, 4
        %vm472 = vcmask 1043456
        %v473 = vsel %vm472, %v462, %v468
        %v474 = vsel %vm472, %v464, %v469
        %v475 = vld [vmem:[#allocation7] sm:$0xff]
        %v476 = vld [vmem:[#allocation7 + $0x8] sm:$0xff]
        %v477 = vld [vmem:[#allocation7 + $0x10] sm:$0x1]
        %v478 = vld [vmem:[#allocation7 + $0x18] sm:$0x1]
        %479 = vrot.lane.b32.xlu0 %v473, 17
        %v480 = vpop.permute.xlu0 %479
        %481 = vrot.lane.b32.xlu0 %v474, 17
        %v482 = vpop.permute.xlu0 %481
        %v483 = vlaneseq
        %v484 = vand.u32 %v483, 127
        %vm485 = vcmp.lt.s32.totalorder %v484, 17
        %v486 = vsel %vm485, %v480, %v482
        %v487 = vsel %vm485, %v482, %v480
        %v488 = vlaneseq
        %v489 = vshrl.u32 %v488, 7
        %v490 = vsub.s32 0, %v489
        %v491 = vrot.slane %v475, %v490
        %v492 = vlaneseq
        %v493 = vshrl.u32 %v492, 7
        %v494 = vsub.s32 0, %v493
        %v495 = vrot.slane %v476, %v494
        %v496 = vmul.f32 %v487, %v491
        %v497 = vmul.f32 %v486, %v495
        %498 = vrot.lane.b32.xlu0 %v473, 16
        %v499 = vpop.permute.xlu0 %498
        %500 = vrot.lane.b32.xlu0 %v474, 16
        %v501 = vpop.permute.xlu0 %500
        %vm502 = vcmp.lt.s32.totalorder %v484, 16
        %v503 = vsel %vm502, %v499, %v501
        %v504 = vsel %vm502, %v501, %v499
        %v505 = vlaneseq
        %v506 = vshrl.u32 %v505, 7
        %v507 = vsub.s32 1, %v506
        %v508 = vrot.slane %v475, %v507
        %v509 = vlaneseq
        %v510 = vshrl.u32 %v509, 7
        %v511 = vsub.s32 1, %v510
        %v512 = vrot.slane %v476, %v511
        %v513 = vmul.f32 %v504, %v508
        %v514 = vmul.f32 %v503, %v512
        %515 = vrot.lane.b32.xlu0 %v473, 15
        %v516 = vpop.permute.xlu0 %515
        %517 = vrot.lane.b32.xlu0 %v474, 15
        %v518 = vpop.permute.xlu0 %517
        %vm519 = vcmp.lt.s32.totalorder %v484, 15
        %v520 = vsel %vm519, %v516, %v518
        %v521 = vsel %vm519, %v518, %v516
        %v522 = vlaneseq
        %v523 = vshrl.u32 %v522, 7
        %v524 = vsub.s32 2, %v523
        %v525 = vrot.slane %v475, %v524
        %v526 = vlaneseq
        %v527 = vshrl.u32 %v526, 7
        %v528 = vsub.s32 2, %v527
        %v529 = vrot.slane %v476, %v528
        %v530 = vmul.f32 %v521, %v525
        %v531 = vmul.f32 %v520, %v529
        %532 = vrot.lane.b32.xlu0 %v473, 1
        %v533 = vpop.permute.xlu0 %532
        %534 = vrot.lane.b32.xlu0 %v474, 1
        %v535 = vpop.permute.xlu0 %534
        %vm536 = vcmp.lt.s32.totalorder %v484, 1
        %v537 = vsel %vm536, %v533, %v535
        %v538 = vsel %vm536, %v535, %v533
        %v539 = vlaneseq
        %v540 = vshrl.u32 %v539, 7
        %v541 = vsub.s32 3, %v540
        %v542 = vrot.slane %v475, %v541
        %v543 = vlaneseq
        %v544 = vshrl.u32 %v543, 7
        %v545 = vsub.s32 3, %v544
        %v546 = vrot.slane %v476, %v545
        %v547 = vmul.f32 %v538, %v542
        %v548 = vmul.f32 %v537, %v546
        %549 = vrot.lane.b32.xlu0 %v473, 127
        %v550 = vpop.permute.xlu0 %549
        %551 = vrot.lane.b32.xlu0 %v474, 127
        %v552 = vpop.permute.xlu0 %551
        %vm553 = vcmp.lt.s32.totalorder %v484, 127
        %v554 = vsel %vm553, %v550, %v552
        %v555 = vsel %vm553, %v552, %v550
        %v556 = vlaneseq
        %v557 = vshrl.u32 %v556, 7
        %v558 = vsub.s32 5, %v557
        %v559 = vrot.slane %v475, %v558
        %v560 = vlaneseq
        %v561 = vshrl.u32 %v560, 7
        %v562 = vsub.s32 5, %v561
        %v563 = vrot.slane %v476, %v562
        %v564 = vmul.f32 %v554, %v559
        %v565 = vmul.f32 %v555, %v563
        %566 = vrot.lane.b32.xlu0 %v473, 113
        %v567 = vpop.permute.xlu0 %566
        %568 = vrot.lane.b32.xlu0 %v474, 113
        %v569 = vpop.permute.xlu0 %568
        %vm570 = vcmp.lt.s32.totalorder %v484, 113
        %v571 = vsel %vm570, %v567, %v569
        %v572 = vsel %vm570, %v569, %v567
        %v573 = vlaneseq
        %v574 = vshrl.u32 %v573, 7
        %v575 = vsub.s32 6, %v574
        %v576 = vrot.slane %v475, %v575
        %v577 = vlaneseq
        %v578 = vshrl.u32 %v577, 7
        %v579 = vsub.s32 6, %v578
        %v580 = vrot.slane %v476, %v579
        %v581 = vmul.f32 %v571, %v576
        %v582 = vmul.f32 %v572, %v580
        %583 = vrot.lane.b32.xlu0 %v473, 112
        %v584 = vpop.permute.xlu0 %583
        %585 = vrot.lane.b32.xlu0 %v474, 112
        %v586 = vpop.permute.xlu0 %585
        %vm587 = vcmp.lt.s32.totalorder %v484, 112
        %v588 = vsel %vm587, %v584, %v586
        %v589 = vsel %vm587, %v586, %v584
        %v590 = vlaneseq
        %v591 = vshrl.u32 %v590, 7
        %v592 = vsub.s32 7, %v591
        %v593 = vrot.slane %v475, %v592
        %v594 = vlaneseq
        %v595 = vshrl.u32 %v594, 7
        %v596 = vsub.s32 7, %v595
        %v597 = vrot.slane %v476, %v596
        %v598 = vmul.f32 %v588, %v593
        %v599 = vmul.f32 %v589, %v597
        %600 = vrot.lane.b32.xlu0 %v473, 111
        %v601 = vpop.permute.xlu0 %600
        %602 = vrot.lane.b32.xlu0 %v474, 111
        %v603 = vpop.permute.xlu0 %602
        %vm604 = vcmp.lt.s32.totalorder %v484, 111
        %v605 = vsel %vm604, %v601, %v603
        %v606 = vsel %vm604, %v603, %v601
        %v607 = vlaneseq
        %v608 = vshrl.u32 %v607, 7
        %v609 = vsub.s32 0, %v608
        %v610 = vrot.slane %v477, %v609
        %v611 = vlaneseq
        %v612 = vshrl.u32 %v611, 7
        %v613 = vsub.s32 0, %v612
        %v614 = vrot.slane %v478, %v613
        %v615 = vmul.f32 %v605, %v610
        %v616 = vmul.f32 %v606, %v614
        %v617 = vld [vmem:[%s4] sm:$0xf]
        %v618 = vld [vmem:[%s5] sm:$0xf]
        %620 = vset.pattern.permute.xlu0 0
        %621 = vperm.xlu0 %620, %v618
        %v622 = vpop.permute.xlu0 %621
        %vm624 = vcmask 588800
        %v626 = vsel %vm624, %v617, 0
        %628 = vmatprep.subr.mxu0 %v497
        %629 = vmatpush1.msra.mxu0 %v496
        %630 = vmatprep.subr.mxu0 %v514
        %631 = vmatpush1.msra.mxu0 %v513
        %632 = vmatprep.subr.mxu0 %v531
        %633 = vmatpush1.msra.mxu0 %v530
        %634 = vmatprep.subr.mxu0 %v548
        %635 = vmatpush1.msra.mxu0 %v547
        %636 = vmatprep.subr.mxu0 %v474
        %637 = vmatpush1.msra.mxu0 %v473
        %638 = vmatprep.subr.mxu0 %v565
        %639 = vmatpush1.msra.mxu0 %v564
        %640 = vmatprep.subr.mxu0 %v582
        %641 = vmatpush1.msra.mxu0 %v581
        %642 = vmatprep.subr.mxu0 %v599
        %643 = vmatpush1.msra.mxu0 %v598
        %644 = vmatprep.subr.mxu0 %v616
        %645 = vmatpush1.msra.mxu0 %v615
        %646 = vmatprep.subr.mxu0 0.0
        %647 = vmatpush1.msra.mxu0 0.0
        %648 = vmatprep.subr.mxu0 0.0
        %649 = vmatpush1.msra.mxu0 0.0
        %650 = vmatprep.subr.mxu0 0.0
        %651 = vmatpush1.msra.mxu0 0.0
        %652 = vmatprep.subr.mxu0 0.0
        %653 = vmatpush1.msra.mxu0 0.0
        %654 = vmatprep.subr.mxu0 0.0
        %655 = vmatpush1.msra.mxu0 0.0
        %656 = vmatprep.subr.mxu0 0.0
        %657 = vmatpush1.msra.mxu0 0.0
        %658 = vmatprep.subr.mxu0 0.0
        %659 = vmatpush1.msra.mxu0 0.0
        %660 = vmatprep.subr.mxu0 0.0
        %661 = vmatpush1.msra.mxu0 0.0
        %662 = vmatprep.subr.mxu0 0.0
        %663 = vmatpush1.msra.mxu0 0.0
        %664 = vmatprep.subr.mxu0 0.0
        %665 = vmatpush1.msra.mxu0 0.0
        %666 = vmatprep.subr.mxu0 0.0
        %667 = vmatpush1.msra.mxu0 0.0
        %668 = vmatprep.subr.mxu0 0.0
        %669 = vmatpush1.msra.mxu0 0.0
        %670 = vmatprep.subr.mxu0 0.0
        %671 = vmatpush1.msra.mxu0 0.0
        %672 = vmatprep.subr.mxu0 0.0
        %673 = vmatpush1.msra.mxu0 0.0
        %674 = vmatprep.subr.mxu0 0.0
        %675 = vmatpush1.msra.mxu0 0.0
        %676 = vmatprep.subr.mxu0 0.0
        %677 = vmatpush1.msra.mxu0 0.0
        %678 = vmatprep.subr.mxu0 0.0
        %679 = vmatpush1.msra.mxu0 0.0
        %680 = vmatprep.subr.mxu0 0.0
        %681 = vmatpush1.msra.mxu0 0.0
        %682 = vmatprep.subr.mxu0 0.0
        %683 = vmatpush1.msra.mxu0 0.0
        %684 = vmatprep.subr.mxu0 0.0
        %685 = vmatpush1.msra.mxu0 0.0
        %686 = vmatprep.subr.mxu0 0.0
        %687 = vmatpush1.msra.mxu0 0.0
        %688 = vmatprep.subr.mxu0 0.0
        %689 = vmatpush1.msra.mxu0 0.0
        %690 = vmatprep.subr.mxu0 0.0
        %691 = vmatpush1.msra.mxu0 0.0
        %692 = vmatprep.mubr.f32.mxu0 0.0
        %693 = vmatmul.mubr.f32.gmra.mrb[0].mxu0 %v626
        %v694 = vpop.f32.mrb[0].mxu0
        %v695 = vadd.f32 %v622, %v694
        %v696 = vpop.f32.mrb[0].mxu0
        %v697 = vadd.f32 %v622, %v696
        %698 = vdwg.mxu0
        %v699 = vmul.f32 %v695, 0.5
        %v700 = vmul.f32 %v697, 0.5
        %v701 = vmul.f32 %v695, 0.70710677
        %v702 = vmul.f32 %v697, 0.70710677
        %v703 = vand.u32 2147483647, %v701
        %v704 = vand.u32 2147483647, %v702
        %v705 = vmul.f32 %v703, 0.3275911
        %v706 = vmul.f32 %v704, 0.3275911
        %v707 = vadd.f32 %v705, 1.0
        %v708 = vadd.f32 %v706, 1.0
        %v709 = vrcp.pop %v707
        %v710 = vmul.f32 1.0, %v709
        %v711 = vrcp.pop %v708
        %v712 = vmul.f32 1.0, %v711
        %v713 = vmul.f32 %v710, 1.0614054
        %v714 = vmul.f32 %v712, 1.0614054
        %v715 = vadd.f32 %v713, -1.4531521
        %v716 = vadd.f32 %v714, -1.4531521
        %v717 = vmul.f32 %v715, %v710
        %v718 = vmul.f32 %v716, %v712
        %v719 = vadd.f32 %v717, 1.4214138
        %v720 = vadd.f32 %v718, 1.4214138
        %v721 = vmul.f32 %v719, %v710
        %v722 = vmul.f32 %v720, %v712
        %v723 = vadd.f32 %v721, -0.28449672
        %v724 = vadd.f32 %v722, -0.28449672
        %v725 = vmul.f32 %v723, %v710
        %v726 = vmul.f32 %v724, %v712
        %v727 = vadd.f32 %v725, 0.2548296
        %v728 = vadd.f32 %v726, 0.2548296
        %v729 = vmul.f32 %v727, %v710
        %v730 = vmul.f32 %v728, %v712
        %v731 = vsub.f32 0.0, %v703
        %v732 = vsub.f32 0.0, %v704
        %v733 = vmul.f32 %v731, %v703
        %v734 = vmul.f32 %v732, %v704
        %v735 = vmul.f32 %v733, 1.442695
        %v736 = vpow.pop %v735
        %v737 = vmul.f32 %v734, 1.442695
        %v738 = vpow.pop %v737
        %v739 = vmul.f32 %v729, %v736
        %v740 = vmul.f32 %v730, %v738
        %v741 = vsub.f32 1.0, %v739
        %v742 = vsub.f32 1.0, %v740
        %vm743 = vcmp.ge.f32.partialorder %v701, 0.0
        %vm744 = vcmp.ge.f32.partialorder %v702, 0.0
        %v745 = vsub.f32 0.0, %v741
        %v746 = vsub.f32 0.0, %v742
        %v747 = vsel %vm743, %v741, %v745
        %v748 = vsel %vm744, %v742, %v746
        %v749 = vadd.f32 %v747, 1.0
        %v750 = vadd.f32 %v748, 1.0
        %v751 = vmul.f32 %v699, %v749
        %v752 = vmul.f32 %v700, %v750
        %753 = vrot.lane.b32.xlu0 %v751, 17
        %v754 = vpop.permute.xlu0 %753
        %755 = vrot.lane.b32.xlu0 %v752, 17
        %v756 = vpop.permute.xlu0 %755
        %v757 = vsel %vm485, %v754, %v756
        %v758 = vsel %vm485, %v756, %v754
        %v759 = vmul.f32 %v758, %v491
        %v760 = vmul.f32 %v757, %v495
        %761 = vrot.lane.b32.xlu0 %v751, 16
        %v762 = vpop.permute.xlu0 %761
        %763 = vrot.lane.b32.xlu0 %v752, 16
        %v764 = vpop.permute.xlu0 %763
        %v765 = vsel %vm502, %v762, %v764
        %v766 = vsel %vm502, %v764, %v762
        %v767 = vmul.f32 %v766, %v508
        %v768 = vmul.f32 %v765, %v512
        %769 = vrot.lane.b32.xlu0 %v751, 15
        %v770 = vpop.permute.xlu0 %769
        %771 = vrot.lane.b32.xlu0 %v752, 15
        %v772 = vpop.permute.xlu0 %771
        %v773 = vsel %vm519, %v770, %v772
        %v774 = vsel %vm519, %v772, %v770
        %v775 = vmul.f32 %v774, %v525
        %v776 = vmul.f32 %v773, %v529
        %777 = vrot.lane.b32.xlu0 %v751, 1
        %v778 = vpop.permute.xlu0 %777
        %779 = vrot.lane.b32.xlu0 %v752, 1
        %v780 = vpop.permute.xlu0 %779
        %v781 = vsel %vm536, %v778, %v780
        %v782 = vsel %vm536, %v780, %v778
        %v783 = vmul.f32 %v782, %v542
        %v784 = vmul.f32 %v781, %v546
        %785 = vrot.lane.b32.xlu0 %v751, 127
        %v786 = vpop.permute.xlu0 %785
        %787 = vrot.lane.b32.xlu0 %v752, 127
        %v788 = vpop.permute.xlu0 %787
        %v789 = vsel %vm553, %v786, %v788
        %v790 = vsel %vm553, %v788, %v786
        %v791 = vmul.f32 %v789, %v559
        %v792 = vmul.f32 %v790, %v563
        %793 = vrot.lane.b32.xlu0 %v751, 113
        %v794 = vpop.permute.xlu0 %793
        %795 = vrot.lane.b32.xlu0 %v752, 113
        %v796 = vpop.permute.xlu0 %795
        %v797 = vsel %vm570, %v794, %v796
        %v798 = vsel %vm570, %v796, %v794
        %v799 = vmul.f32 %v797, %v576
        %v800 = vmul.f32 %v798, %v580
        %801 = vrot.lane.b32.xlu0 %v751, 112
        %v802 = vpop.permute.xlu0 %801
        %803 = vrot.lane.b32.xlu0 %v752, 112
        %v804 = vpop.permute.xlu0 %803
        %v805 = vsel %vm587, %v802, %v804
        %v806 = vsel %vm587, %v804, %v802
        %v807 = vmul.f32 %v805, %v593
        %v808 = vmul.f32 %v806, %v597
        %809 = vrot.lane.b32.xlu0 %v751, 111
        %v810 = vpop.permute.xlu0 %809
        %811 = vrot.lane.b32.xlu0 %v752, 111
        %v812 = vpop.permute.xlu0 %811
        %v813 = vsel %vm604, %v810, %v812
        %v814 = vsel %vm604, %v812, %v810
        %v815 = vmul.f32 %v813, %v610
        %v816 = vmul.f32 %v814, %v614
        %v819 = vrot.slane %v767, 4
        %v820 = vrot.slane %v768, 4
        %v825 = vrot.slane %v783, 4
        %v826 = vrot.slane %v784, 4
        %v831 = vrot.slane %v791, 4
        %v832 = vrot.slane %v792, 4
        %v837 = vrot.slane %v807, 4
        %v838 = vrot.slane %v808, 4
        %v841 = vsel %vm472, %v759, %v819
        %v842 = vsel %vm472, %v760, %v820
        %v843 = vsel %vm472, %v775, %v825
        %v844 = vsel %vm472, %v776, %v826
        %v845 = vsel %vm472, %v751, %v831
        %v846 = vsel %vm472, %v752, %v832
        %v847 = vsel %vm472, %v799, %v837
        %v848 = vsel %vm472, %v800, %v838
        %v849 = vld [vmem:[%s6] sm:$0xff]
        %v850 = vld [vmem:[%s7] sm:$0xff]
        %852 = vset.pattern.permute.xlu0 0
        %853 = vperm.xlu0 %852, %v850
        %v854 = vpop.permute.xlu0 %853
        %vm856 = vcmask 293888
        %v858 = vsel %vm856, %v849, 0
        %v861 = vsel %vm472, %v815, 0
        %v864 = vsel %vm472, %v816, 0
        %866 = vmatprep.subr.mxu0 %v842
        %867 = vmatpush1.msra.mxu0 %v841
        %868 = vmatprep.subr.mxu0 %v844
        %869 = vmatpush1.msra.mxu0 %v843
        %870 = vmatprep.subr.mxu0 %v846
        %871 = vmatpush1.msra.mxu0 %v845
        %872 = vmatprep.subr.mxu0 %v848
        %873 = vmatpush1.msra.mxu0 %v847
        %874 = vmatprep.subr.mxu0 %v864
        %875 = vmatpush1.msra.mxu0 %v861
        %876 = vmatprep.subr.mxu0 0.0
        %877 = vmatpush1.msra.mxu0 0.0
        %878 = vmatprep.subr.mxu0 0.0
        %879 = vmatpush1.msra.mxu0 0.0
        %880 = vmatprep.subr.mxu0 0.0
        %881 = vmatpush1.msra.mxu0 0.0
        %882 = vmatprep.subr.mxu0 0.0
        %883 = vmatpush1.msra.mxu0 0.0
        %884 = vmatprep.subr.mxu0 0.0
        %885 = vmatpush1.msra.mxu0 0.0
        %886 = vmatprep.subr.mxu0 0.0
        %887 = vmatpush1.msra.mxu0 0.0
        %888 = vmatprep.subr.mxu0 0.0
        %889 = vmatpush1.msra.mxu0 0.0
        %890 = vmatprep.subr.mxu0 0.0
        %891 = vmatpush1.msra.mxu0 0.0
        %892 = vmatprep.subr.mxu0 0.0
        %893 = vmatpush1.msra.mxu0 0.0
        %894 = vmatprep.subr.mxu0 0.0
        %895 = vmatpush1.msra.mxu0 0.0
        %896 = vmatprep.subr.mxu0 0.0
        %897 = vmatpush1.msra.mxu0 0.0
        %898 = vmatprep.subr.mxu0 0.0
        %899 = vmatpush1.msra.mxu0 0.0
        %900 = vmatprep.subr.mxu0 0.0
        %901 = vmatpush1.msra.mxu0 0.0
        %902 = vmatprep.subr.mxu0 0.0
        %903 = vmatpush1.msra.mxu0 0.0
        %904 = vmatprep.subr.mxu0 0.0
        %905 = vmatpush1.msra.mxu0 0.0
        %906 = vmatprep.subr.mxu0 0.0
        %907 = vmatpush1.msra.mxu0 0.0
        %908 = vmatprep.subr.mxu0 0.0
        %909 = vmatpush1.msra.mxu0 0.0
        %910 = vmatprep.subr.mxu0 0.0
        %911 = vmatpush1.msra.mxu0 0.0
        %912 = vmatprep.subr.mxu0 0.0
        %913 = vmatpush1.msra.mxu0 0.0
        %914 = vmatprep.subr.mxu0 0.0
        %915 = vmatpush1.msra.mxu0 0.0
        %916 = vmatprep.subr.mxu0 0.0
        %917 = vmatpush1.msra.mxu0 0.0
        %918 = vmatprep.subr.mxu0 0.0
        %919 = vmatpush1.msra.mxu0 0.0
        %920 = vmatprep.subr.mxu0 0.0
        %921 = vmatpush1.msra.mxu0 0.0
        %922 = vmatprep.subr.mxu0 0.0
        %923 = vmatpush1.msra.mxu0 0.0
        %924 = vmatprep.subr.mxu0 0.0
        %925 = vmatpush1.msra.mxu0 0.0
        %926 = vmatprep.subr.mxu0 0.0
        %927 = vmatpush1.msra.mxu0 0.0
        %928 = vmatprep.subr.mxu0 0.0
        %929 = vmatpush1.msra.mxu0 0.0
        %930 = vmatprep.mubr.f32.mxu0 0.0
        %931 = vmatmul.mubr.f32.gmra.mrb[0].mxu0 %v858
        %v932 = vpop.f32.mrb[0].mxu0
        %v933 = vadd.f32 %v854, %v932
        %v934 = vpop.f32.mrb[0].mxu0
        %v935 = vadd.f32 %v854, %v934
        %936 = vdwg.mxu0
        %v937 = vmul.f32 %v933, 0.5
        %v938 = vmul.f32 %v935, 0.5
        %v939 = vmul.f32 %v933, 0.70710677
        %v940 = vmul.f32 %v935, 0.70710677
        %v941 = vand.u32 2147483647, %v939
        %v942 = vand.u32 2147483647, %v940
        %v943 = vmul.f32 %v941, 0.3275911
        %v944 = vmul.f32 %v942, 0.3275911
        %v945 = vadd.f32 %v943, 1.0
        %v946 = vadd.f32 %v944, 1.0
        %v947 = vrcp.pop %v945
        %v948 = vmul.f32 1.0, %v947
        %v949 = vrcp.pop %v946
        %v950 = vmul.f32 1.0, %v949
        %v951 = vmul.f32 %v948, 1.0614054
        %v952 = vmul.f32 %v950, 1.0614054
        %v953 = vadd.f32 %v951, -1.4531521
        %v954 = vadd.f32 %v952, -1.4531521
        %v955 = vmul.f32 %v953, %v948
        %v956 = vmul.f32 %v954, %v950
        %v957 = vadd.f32 %v955, 1.4214138
        %v958 = vadd.f32 %v956, 1.4214138
        %v959 = vmul.f32 %v957, %v948
        %v960 = vmul.f32 %v958, %v950
        %v961 = vadd.f32 %v959, -0.28449672
        %v962 = vadd.f32 %v960, -0.28449672
        %v963 = vmul.f32 %v961, %v948
        %v964 = vmul.f32 %v962, %v950
        %v965 = vadd.f32 %v963, 0.2548296
        %v966 = vadd.f32 %v964, 0.2548296
        %v967 = vmul.f32 %v965, %v948
        %v968 = vmul.f32 %v966, %v950
        %v969 = vsub.f32 0.0, %v941
        %v970 = vsub.f32 0.0, %v942
        %v971 = vmul.f32 %v969, %v941
        %v972 = vmul.f32 %v970, %v942
        %v973 = vmul.f32 %v971, 1.442695
        %v974 = vpow.pop %v973
        %v975 = vmul.f32 %v972, 1.442695
        %v976 = vpow.pop %v975
        %v977 = vmul.f32 %v967, %v974
        %v978 = vmul.f32 %v968, %v976
        %v979 = vsub.f32 1.0, %v977
        %v980 = vsub.f32 1.0, %v978
        %vm981 = vcmp.ge.f32.partialorder %v939, 0.0
        %vm982 = vcmp.ge.f32.partialorder %v940, 0.0
        %v983 = vsub.f32 0.0, %v979
        %v984 = vsub.f32 0.0, %v980
        %v985 = vsel %vm981, %v979, %v983
        %v986 = vsel %vm982, %v980, %v984
        %v987 = vadd.f32 %v985, 1.0
        %v988 = vadd.f32 %v986, 1.0
        %v989 = vmul.f32 %v937, %v987
        %v990 = vmul.f32 %v938, %v988
        %991 = vst [vmem:[%s364] sm:$0xff] %v989
        %992 = vst [vmem:[%s364 + $0x8] sm:$0xff] %v990
        %s993 = sand.u32 %s212, 1
        %s994 = scalar_lea.sflag [#allocation4], %s993
        %s995 = sand.u32 %s212, 1
        %s996 = smul.addr %s995, 16
        %s997 = scalar_lea.vmem [#allocation8], %s996
        // Predicated region
        $region65: #{tpu_custom_call.1} parent=51 // pred_check
          %p998 = pneg %p222
        $region66: #{tpu_custom_call.1} parent=51 // pred_check_branch
          %1000 = sbr.rel (%p998) target = $region68
        $region67: #{tpu_custom_call.1} parent=51 // pred_region
          %s1002 = ssub.s32 256, 256
          %1003 = vsyncadd %s994, %s1002
          %s1004 = smul.addr %s26, 2
          %s1005 = smul.addr %s1004, 128
          %s1006 = scalar_lea.hbm %s8, %s1005
          %s1008 = sshll.u32 %s997, 4
          %s1009 = int_to_ptr.vmem [resolvable:$true] %s1008
          %1011 = dma.vmem_to_hbm [thread:$0]  %s1009, 256, %s1006, %s994
        $region68: #{tpu_custom_call.1} parent=51 // pred_fallthru
          _
      $region52: #{tpu_custom_call.1} parent=5 // pred_fallthru
        _
      %p1012 = scmp.le.s32.totalorder 2, %s21
      // Predicated region
      $region69: #{tpu_custom_call.1} parent=5 // pred_check
        %p1013 = pneg %p1012
      $region70: #{tpu_custom_call.1} parent=5 // pred_check_branch
        %1015 = sbr.rel (%p1013) target = $region72
      $region71: #{tpu_custom_call.1} parent=5 // pred_region
        %s1016 = ssub.s32 %s21, 2
        // Predicated region
        $region73: #{tpu_custom_call.1} parent=71 // pred_check
          %p1017 = pneg %p228
        $region74: #{tpu_custom_call.1} parent=71 // pred_check_branch
          %1019 = sbr.rel (%p1017) target = $region76
        $region75: #{tpu_custom_call.1} parent=71 // pred_region
          %s1020 = sand.u32 %s213, 1
          %s1021 = scalar_lea.sflag [#allocation4], %s1020
          %s1022 = sand.u32 %s213, 1
          %s1023 = smul.addr %s1022, 16
          %s1024 = scalar_lea.vmem [#allocation8], %s1023
          %1025 = dma.done %s1021, 256
        $region76: #{tpu_custom_call.1} parent=71 // pred_fallthru
          _
      $region72: #{tpu_custom_call.1} parent=5 // pred_fallthru
        _
    $region6: #{tpu_custom_call.1} parent=1 // loop_footer
      %s25 = sadd.s32 1, %s21
    $region7: #{tpu_custom_call.1} parent=1 // loop_footer_branch
      %20 = sbr.rel target = $region3
    $region8: #{tpu_custom_call.1} parent=1 // loop_exit
      _
    %1026 = vsyncpa [#allocation3], 1
    %s1027 = scalar_lea.sflag [#allocation3], 1
    %1028 = vsyncpa %s1027, 1
    %1029 = vsyncpa [#allocation6], 1
    %1030 = vsyncpa [#allocation4], 1
    %s1031 = scalar_lea.sflag [#allocation4], 1
    %1032 = vsyncpa %s1031, 1

</llo_original>
